<compile_context>
chip_gen: v7x
topology: tpu7x:2x2x1
jax: 0.10.0
libtpu: 0.0.40
codegen_flags: <defaults>
</compile_context>

<pallas_src>
import numpy as np
import jax
import jax.numpy as jnp
from jax import lax
from jax.experimental import pallas as pl
from jax.experimental.pallas import tpu as pltpu

_LANES = 128          # lane width of a vreg (last dim must map to lanes)
_MAX_TILE_M = 512     # 512x128xf32 = 256 KiB per input tile (double-buffered -> ~1 MiB)


def _make_charbonnier_kernel(eps, tile_m, total, needs_mask):
    def kernel(x_ref, y_ref, o_ref):
        x = x_ref[...].astype(jnp.float32)
        y = y_ref[...].astype(jnp.float32)
        d = x - y
        v = jnp.sqrt(d * d + eps)           # sqrt goes to the EUP slot
        if needs_mask:
            # Mask out padded tail elements (they'd each contribute sqrt(eps)).
            row = lax.broadcasted_iota(jnp.int32, (tile_m, _LANES), 0)
            lane = lax.broadcasted_iota(jnp.int32, (tile_m, _LANES), 1)
            gidx = (pl.program_id(0) * tile_m + row) * _LANES + lane
            v = jnp.where(gidx < total, v, 0.0)
        # Per-tile partial sum over sublanes -> lane-dense (1, 128) output row.
        o_ref[...] = jnp.sum(v, axis=0, keepdims=True)
    return kernel


def charbonnier_loss_pallas(x, y, eps=1e-6):
    """Charbonnier (smooth-L1) loss: sum(sqrt((x-y)^2 + eps))."""
    assert x.shape == y.shape, "x and y must have the same shape"
    total = int(np.prod(x.shape)) if x.ndim > 0 else 1

    xf = jnp.ravel(x)
    yf = jnp.ravel(y)

    # Row count at 128 lanes, tile height a multiple of 8 (sublane granularity).
    m_rows = -(-total // _LANES)
    tile_m = _MAX_TILE_M if m_rows >= _MAX_TILE_M else (-(-m_rows // 8)) * 8
    num_tiles = -(-m_rows // tile_m)
    m_pad = num_tiles * tile_m
    padded_total = m_pad * _LANES
    needs_mask = padded_total != total

    if needs_mask:
        pad = padded_total - total
        xf = jnp.pad(xf, (0, pad))
        yf = jnp.pad(yf, (0, pad))

    x2 = xf.reshape(m_pad, _LANES)
    y2 = yf.reshape(m_pad, _LANES)

    partials = pl.pallas_call(
        _make_charbonnier_kernel(float(eps), tile_m, total, needs_mask),
        out_shape=jax.ShapeDtypeStruct((num_tiles, _LANES), jnp.float32),
        grid=(num_tiles,),
        in_specs=[pl.BlockSpec((tile_m, _LANES), lambda i: (i, 0)),
                  pl.BlockSpec((tile_m, _LANES), lambda i: (i, 0))],
        out_specs=pl.BlockSpec((1, _LANES), lambda i: (i, 0)),
        compiler_params=pltpu.CompilerParams(
            dimension_semantics=("parallel",)),
    )(x2, y2)

    # TODO(synk): final (num_tiles x 128) partial-sum reduction kept in plain
    # JAX — it is a few KiB and not worth a second kernel launch.
    return jnp.sum(partials)


def charbonnier_loss_ref(x, y, eps=1e-6):
    d = x.astype(jnp.float32) - y.astype(jnp.float32)
    return jnp.sum(jnp.sqrt(d * d + eps))


if __name__ == "__main__":
    key = jax.random.PRNGKey(0)
    kx, ky, ka, kb = jax.random.split(key, 4)

    eps = 1e-6

    # Primary test: shapes matching a typical SR feature map.
    x = jax.random.normal(kx, (2, 4, 16, 16), jnp.float32)
    y = jax.random.normal(ky, (2, 4, 16, 16), jnp.float32)

    out = jax.block_until_ready(charbonnier_loss_pallas(x, y, eps))
    ref = jax.block_until_ready(charbonnier_loss_ref(x, y, eps))
    np.testing.assert_allclose(np.asarray(out), np.asarray(ref),
                               rtol=1e-5, atol=1e-5)

    # Irregular shape: exercises the in-kernel tail mask (padding path).
    a = jax.random.normal(ka, (3, 5, 17, 19), jnp.float32)
    b = jax.random.normal(kb, (3, 5, 17, 19), jnp.float32)

    out2 = jax.block_until_ready(charbonnier_loss_pallas(a, b, eps))
    ref2 = jax.block_until_ready(charbonnier_loss_ref(a, b, eps))
    np.testing.assert_allclose(np.asarray(out2), np.asarray(ref2),
                               rtol=1e-5, atol=1e-5)

    print("KERNEL_OK")
</pallas_src>

<mosaic_0001>
module attributes {stable_mosaic.version = 11 : i64} {
  func.func @kernel(%arg0: i32, %arg1: memref<16x128xf32, #tpu.memory_space<vmem>>, %arg2: memref<16x128xf32, #tpu.memory_space<vmem>>, %arg3: memref<1x128xf32, #tpu.memory_space<vmem>>) attributes {dimension_semantics = [#tpu.dimension_semantics<parallel>], iteration_bounds = array<i64: 1>, scalar_prefetch = 0 : i64, scratch_operands = 0 : i64, tpu.core_type = #tpu.core_type<tc>, window_params = [{transform_indices = @transform_0, window_bounds = array<i64: 16, 128>}, {transform_indices = @transform_1, window_bounds = array<i64: 16, 128>}, {transform_indices = @transform_2, window_bounds = array<i64: 1, 128>}]} {
    %c0 = arith.constant 0 : index
    %c0_0 = arith.constant 0 : index
    %0 = vector.load %arg1[%c0, %c0_0] : memref<16x128xf32, #tpu.memory_space<vmem>>, vector<16x128xf32>
    %c0_1 = arith.constant 0 : index
    %c0_2 = arith.constant 0 : index
    %1 = vector.load %arg2[%c0_1, %c0_2] : memref<16x128xf32, #tpu.memory_space<vmem>>, vector<16x128xf32>
    %2 = arith.subf %0, %1 : vector<16x128xf32>
    %3 = arith.mulf %2, %2 : vector<16x128xf32>
    %cst = arith.constant 9.99999997E-7 : f32
    %4 = vector.broadcast %cst : f32 to vector<16x128xf32>
    %5 = arith.addf %3, %4 : vector<16x128xf32>
    %6 = math.sqrt %5 : vector<16x128xf32>
    %cst_3 = arith.constant dense<0.000000e+00> : vector<128xf32>
    %7 = vector.multi_reduction <add>, %6, %cst_3 [0] : vector<16x128xf32> to vector<128xf32>
    %8 = vector.shape_cast %7 : vector<128xf32> to vector<1x128xf32>
    %c0_4 = arith.constant 0 : index
    %c0_5 = arith.constant 0 : index
    %9 = vector.load %arg3[%c0_4, %c0_5] : memref<1x128xf32, #tpu.memory_space<vmem>>, vector<1x128xf32>
    tpu.vector_store %arg3[%c0_4, %c0_5], %8 {strides = array<i32>} : memref<1x128xf32, #tpu.memory_space<vmem>>, vector<1x128xf32>,
    return
  }
  func.func @transform_0(%arg0: i32) -> (i32, i32) {
    %c0_i32 = arith.constant 0 : i32
    %c0_i32_0 = arith.constant 0 : i32
    return %arg0, %c0_i32 : i32, i32
  }
  func.func @transform_1(%arg0: i32) -> (i32, i32) {
    %c0_i32 = arith.constant 0 : i32
    %c0_i32_0 = arith.constant 0 : i32
    return %arg0, %c0_i32 : i32, i32
  }
  func.func @transform_2(%arg0: i32) -> (i32, i32) {
    %c0_i32 = arith.constant 0 : i32
    %c0_i32_0 = arith.constant 0 : i32
    return %arg0, %c0_i32 : i32, i32
  }
}

</mosaic_0001>

<llo_original>
// kernel: tpu_custom_call.1
$region0: #{tpu_custom_call.1}
  #allocation0 [shape = 'u32[]', space=smem, size = 0x4, offset = 0x4, fixed_abs, tag = 'smem constant byte address 0x4 - core index']
  #allocation1 [shape = 'u32[144,128]{1,0:T(1,128)}', space=vmem, size = 0x12000, scoped, tag = 'internal scratch']
  %s0 = inlined_call_operand.hbm [shape: f32[16,128], index: 0, kind: input, shape index: {}]
  %s1 = inlined_call_operand.hbm [shape: f32[16,128], index: 1, kind: input, shape index: {}]
  %s2 = inlined_call_operand.hbm [shape: f32[1,128], index: 2, kind: output, shape index: {}]
  %s3 = sld [smem:[#allocation0]]
  $region26: #{tpu_custom_call.1} parent=0
    _
  %s5 = ssub.s32 1, %s3
  %s6 = scalar_select 0, %s5, %s3
  $region1: #{tpu_custom_call.1} parent=0
    #allocation2 [shape = 'u8[8192]{0}', space=vmem, size = 0x2000, scoped, tag = 'input window, operand 0, single buffered']
    #allocation3 [shape = 's32[1]{0}', space=sflag, size = 0x4, scoped, tag = 'scoped memory for tpu_custom_call.1']
    #allocation4 [shape = 's32[1]{0}', space=sflag, size = 0x4, scoped, tag = 'scoped memory for tpu_custom_call.1']
    #allocation5 [shape = 'u8[8192]{0}', space=vmem, size = 0x2000, scoped, tag = 'input window, operand 1, single buffered']
    #allocation6 [shape = 's32[1]{0}', space=sflag, size = 0x4, scoped, tag = 'scoped memory for tpu_custom_call.1']
    #allocation7 [shape = 'u8[512]{0}', space=vmem, size = 0x400, scoped, tag = 'output window, operand 0, single buffered']
    %7 = vsyncpa [#allocation3], 0
    %8 = vsyncpa [#allocation6], 0
    %9 = vsyncpa [#allocation4], 0
    // Predicated region
    $region2: #{tpu_custom_call.1} parent=1 // pred_check
      _
    $region3: #{tpu_custom_call.1} parent=1 // pred_check_branch
      %11 = sbr.rel (0) target = $region5
    $region4: #{tpu_custom_call.1} parent=1 // pred_region
      %s13 = ssub.s32 256, 256
      %14 = vsyncadd [#allocation3], %s13
      %s15 = sshll.u32 [#allocation2], 4
      %s16 = int_to_ptr.vmem [resolvable:$true] %s15
      %21 = dma.hbm_to_vmem [thread:$0]  %s0, 256, %s16, [#allocation3], 128, 128, 8
    $region5: #{tpu_custom_call.1} parent=1 // pred_fallthru
      _
    // Predicated region
    $region6: #{tpu_custom_call.1} parent=1 // pred_check
      _
    $region7: #{tpu_custom_call.1} parent=1 // pred_check_branch
      %23 = sbr.rel (0) target = $region9
    $region8: #{tpu_custom_call.1} parent=1 // pred_region
      %s25 = ssub.s32 256, 256
      %26 = vsyncadd [#allocation6], %s25
      %s27 = sshll.u32 [#allocation5], 4
      %s28 = int_to_ptr.vmem [resolvable:$true] %s27
      %33 = dma.hbm_to_vmem [thread:$0]  %s1, 256, %s28, [#allocation6], 128, 128, 8
    $region9: #{tpu_custom_call.1} parent=1 // pred_fallthru
      _
    // Predicated region
    $region10: #{tpu_custom_call.1} parent=1 // pred_check
      _
    $region11: #{tpu_custom_call.1} parent=1 // pred_check_branch
      %35 = sbr.rel (0) target = $region13
    $region12: #{tpu_custom_call.1} parent=1 // pred_region
      %36 = dma.done [#allocation3], 256
    $region13: #{tpu_custom_call.1} parent=1 // pred_fallthru
      _
    // Predicated region
    $region14: #{tpu_custom_call.1} parent=1 // pred_check
      _
    $region15: #{tpu_custom_call.1} parent=1 // pred_check_branch
      %38 = sbr.rel (0) target = $region17
    $region16: #{tpu_custom_call.1} parent=1 // pred_region
      %39 = dma.done [#allocation6], 256
    $region17: #{tpu_custom_call.1} parent=1 // pred_fallthru
      _
    %v40 = vld [vmem:[#allocation2] sm:$0xff]
    %v41 = vld [vmem:[#allocation2 + $0x8] sm:$0xff]
    %v42 = vld [vmem:[#allocation5] sm:$0xff]
    %v43 = vld [vmem:[#allocation5 + $0x8] sm:$0xff]
    %v44 = vsub.f32 %v40, %v42
    %v45 = vsub.f32 %v41, %v43
    %v46 = vmul.f32 %v44, %v44
    %v47 = vmul.f32 %v45, %v45
    %v48 = vadd.f32 %v46, 1e-06
    %v49 = vadd.f32 %v47, 1e-06
    %v50 = vrsqrt.pop %v48
    %v51 = vmul.f32 %v48, %v50
    %vm52 = vcmp.eq.f32.partialorder %v48, inf
    %v53 = vsel %vm52, %v48, %v51
    %vm54 = vcmp.eq.f32.partialorder %v48, 0.0
    %v55 = vand.u32 %v48, 2147483648
    %v56 = vsel %vm54, %v55, %v53
    %v57 = vrsqrt.pop %v49
    %v58 = vmul.f32 %v49, %v57
    %vm59 = vcmp.eq.f32.partialorder %v49, inf
    %v60 = vsel %vm59, %v49, %v58
    %vm61 = vcmp.eq.f32.partialorder %v49, 0.0
    %v62 = vand.u32 %v49, 2147483648
    %v63 = vsel %vm61, %v62, %v60
    %v64 = vadd.f32 %v56, %v63
    %v65 = vrot.slane %v64, 4
    %v66 = vadd.f32 %v64, %v65
    %v67 = vrot.slane %v66, 2
    %v68 = vadd.f32 %v66, %v67
    %v69 = vrot.slane %v68, 1
    %v70 = vadd.f32 %v68, %v69
    %71 = vst [vmem:[#allocation7] sm:$0x1] %v70
    // Predicated region
    $region18: #{tpu_custom_call.1} parent=1 // pred_check
      _
    $region19: #{tpu_custom_call.1} parent=1 // pred_check_branch
      %73 = sbr.rel (0) target = $region21
    $region20: #{tpu_custom_call.1} parent=1 // pred_region
      %s75 = ssub.s32 16, 16
      %76 = vsyncadd [#allocation4], %s75
      %s78 = sshll.u32 [#allocation7], 4
      %s79 = int_to_ptr.vmem [resolvable:$true] %s78
      %81 = dma.vmem_to_hbm [thread:$0]  %s79, 16, %s2, [#allocation4]
    $region21: #{tpu_custom_call.1} parent=1 // pred_fallthru
      _
    // Predicated region
    $region22: #{tpu_custom_call.1} parent=1 // pred_check
      _
    $region23: #{tpu_custom_call.1} parent=1 // pred_check_branch
      %83 = sbr.rel (0) target = $region25
    $region24: #{tpu_custom_call.1} parent=1 // pred_region
      %84 = dma.done [#allocation4], 16
    $region25: #{tpu_custom_call.1} parent=1 // pred_fallthru
      _
    %85 = vsyncpa [#allocation3], 1
    %86 = vsyncpa [#allocation6], 1
    %87 = vsyncpa [#allocation4], 1

</llo_original>
